<compile_context>
chip_gen: v7x
topology: tpu7x:2x2x1
jax: 0.10.0
libtpu: 0.0.40
codegen_flags: <defaults>
</compile_context>

<pallas_src>
import functools

import jax
import jax.numpy as jnp
from jax.experimental import pallas as pl
from jax.experimental.pallas import tpu as pltpu


def _pem_kernel(x_ref, w1_ref, b1_ref, w2_ref, b2_ref, out_ref, *, factor):
    # fc1, batch-on-lanes: contract the feature dims directly
    # (W1 @ x^T without materializing a transpose):
    #   (hidden, feat) x (tile_b, feat) -> (hidden, tile_b), f32 accumulation.
    h = jax.lax.dot_general(
        w1_ref[...], x_ref[...],
        dimension_numbers=(((1,), (1,)), ((), ())),
        preferred_element_type=jnp.float32)
    h = h + b1_ref[...]                       # (hidden, 1) broadcasts over lanes
    h = jnp.maximum(factor * h, 0.0)          # relu(nonlinear_factor * fc1(x))

    # fc2: (1, hidden) @ (hidden, tile_b) -> (1, tile_b)  (lane-dense result).
    o = jnp.dot(w2_ref[...], h, preferred_element_type=jnp.float32)
    o = o + b2_ref[0, 0]                      # scalar bias from SMEM
    out_ref[...] = jax.nn.sigmoid(factor * o)


def _round_up(n, m):
    return ((n + m - 1) // m) * m


def pem_forward(x, w1, b1, w2, b2, nonlinear_factor, *, tile_b=8192):
    """x: [B, feat] (f32 or bf16); w1: [hidden, feat] (f32 or bf16);
       b1: [hidden, 1]; w2: [1, hidden]; b2: [1, 1] (f32)  ->  [B, 1] f32.

       tile_b is the primary tuning knob (rows per grid step, multiple of
       128); the default 8192 keeps the per-step DMA large enough to hide the
       ~0.35 us fixed pipeline cost on every TPU generation."""
    B, feat_dim = x.shape
    hidden = w1.shape[0]
    assert w1.shape == (hidden, feat_dim)
    assert b1.shape == (hidden, 1)
    assert w2.shape == (1, hidden)
    assert b2.shape == (1, 1)

    x_itemsize = jnp.dtype(x.dtype).itemsize
    lane_feat = _round_up(feat_dim, 128)   # x's minor dim pads to 128 lanes in VMEM

    # --- tile selection -----------------------------------------------------
    # VMEM cap: double-buffered x tile + double-buffered out tile must stay
    # well inside the smallest physical VMEM (v7x: 64 MiB).
    vmem_budget = 40 << 20
    bytes_per_row = 2 * (lane_feat * x_itemsize + 8 * 4)
    max_tile_vmem = max(128, (vmem_budget // bytes_per_row) // 128 * 128)
    max_tile = min(_round_up(max(int(tile_b), 128), 128), max_tile_vmem)

    # >= 2 grid steps for mid/large batches (v7x 2-TC megacore sharding),
    # never below 128 rows per tile (lane-dense output blocks).
    tile = min(max_tile, max(128, _round_up(pl.cdiv(B, 2), 128)))
    grid = pl.cdiv(B, tile)

    # Raise the scoped VMEM limit to what the chosen tile actually needs
    # (defaults are ~16 MiB on v5e, ~32 MiB on v6e/v7x).
    vmem_needed = (2 * tile * lane_feat * x_itemsize   # double-buffered x tiles
                   + 2 * 8 * tile * 4                  # double-buffered out tiles
                   + (2 << 20))                        # residents + headroom
    vmem_limit = int(min(max(vmem_needed, 16 << 20), 48 << 20))

    kernel = functools.partial(_pem_kernel, factor=float(nonlinear_factor))

    # Advisory cost: tiny, memory-bound custom call (helps XLA scheduling).
    cost = pl.CostEstimate(
        flops=2 * B * feat_dim * hidden + 2 * B * hidden,
        transcendentals=B,   # one sigmoid exp per row
        bytes_accessed=(B * feat_dim * x_itemsize
                        + hidden * feat_dim * jnp.dtype(w1.dtype).itemsize
                        + (2 * hidden + 1) * 4
                        + B * 4))

    out = pl.pallas_call(
        kernel,
        out_shape=jax.ShapeDtypeStruct((1, B), jnp.float32),
        grid_spec=pltpu.PrefetchScalarGridSpec(
            num_scalar_prefetch=0,
            grid=(grid,),
            in_specs=[
                # x tile; the partial tail block (B % tile != 0) is handled by
                # Pallas masking -- no host-side jnp.pad copy of x.  If
                # profiling ever shows exposed DMA at step boundaries, add
                # pipeline_mode=pl.Buffered(3) here.
                pl.BlockSpec((tile, feat_dim), lambda i: (i, 0)),
                pl.BlockSpec((hidden, feat_dim), lambda i: (0, 0)),  # W1 resident
                pl.BlockSpec((hidden, 1), lambda i: (0, 0)),         # b1 resident
                pl.BlockSpec((1, hidden), lambda i: (0, 0)),         # W2 resident
                pl.BlockSpec(memory_space=pltpu.MemorySpace.SMEM),   # b2 scalar
            ],
            out_specs=pl.BlockSpec((1, tile), lambda i: (0, i)),     # lane-dense
        ),
        compiler_params=pltpu.CompilerParams(
            dimension_semantics=("parallel",),
            vmem_limit_bytes=vmem_limit),
        cost_estimate=cost,
    )(x, w1, b1, w2, b2)

    # (1, B) lane-dense kernel output -> (B, 1) module output.
    return out[0].reshape(B, 1)


def pem_reference(x, w1, b1, w2, b2, factor):
    h = jax.nn.relu(factor * (x @ w1.T + b1.reshape(1, -1)))
    return jax.nn.sigmoid(factor * (h @ w2.T + b2.reshape(1, 1)))


if __name__ == "__main__":
    # opt = {'pem_feat_dim': 32, 'pem_hidden_dim': 32, 'pem_nonlinear_factor': 0.1}
    feat_dim = 32
    hidden_dim = 32
    nonlinear_factor = 0.1

    key = jax.random.PRNGKey(0)
    kx, kw1, kb1, kw2, kb2 = jax.random.split(key, 5)

    # Parameters in native PyTorch Linear layouts.
    w1 = jax.random.normal(kw1, (hidden_dim, feat_dim), dtype=jnp.float32) * 0.1
    b1 = jax.random.normal(kb1, (hidden_dim, 1), dtype=jnp.float32) * 0.1
    w2 = jax.random.normal(kw2, (1, hidden_dim), dtype=jnp.float32) * 0.1
    b2 = jax.random.normal(kb2, (1, 1), dtype=jnp.float32) * 0.1

    # 1) Small batch: single 128-row tile, one grid step, f32 end to end.
    batch = 16
    x = jax.random.normal(kx, (batch, feat_dim), dtype=jnp.float32)
    y = jax.block_until_ready(pem_forward(x, w1, b1, w2, b2, nonlinear_factor))
    y_ref = pem_reference(x, w1, b1, w2, b2, nonlinear_factor)
    assert y.shape == (batch, 1)
    assert jnp.allclose(y, y_ref, atol=1e-5, rtol=1e-5), "f32 small-batch mismatch"

    # 2) Ragged batch (not a multiple of 128): no host-side pad, two grid
    #    steps (exercises the v7x 2-TC parallel path and tail masking).
    batch2 = 300
    x2 = jax.random.normal(kx, (batch2, feat_dim), dtype=jnp.float32)
    y2 = jax.block_until_ready(pem_forward(x2, w1, b1, w2, b2, nonlinear_factor))
    y2_ref = pem_reference(x2, w1, b1, w2, b2, nonlinear_factor)
    assert y2.shape == (batch2, 1)
    assert jnp.allclose(y2, y2_ref, atol=1e-5, rtol=1e-5), "f32 ragged mismatch"

    # 3) bf16 x / W1 (halves the dominant HBM read on v5e/v6e/v7x); f32
    #    accumulation and f32 elementwise math keep results near f32 ref.
    y3 = jax.block_until_ready(
        pem_forward(x2.astype(jnp.bfloat16), w1.astype(jnp.bfloat16),
                    b1, w2, b2, nonlinear_factor))
    assert y3.shape == (batch2, 1)
    assert jnp.allclose(y3, y2_ref, atol=2e-2, rtol=2e-2), "bf16 mismatch"

    print("KERNEL_OK")
</pallas_src>

<mosaic_0001>
module attributes {stable_mosaic.version = 11 : i64} {
  func.func @_pem_kernel(%arg0: i32, %arg1: memref<128x32xf32, #tpu.memory_space<vmem>>, %arg2: memref<32x32xf32, #tpu.memory_space<vmem>>, %arg3: memref<32x1xf32, #tpu.memory_space<vmem>>, %arg4: memref<1x32xf32, #tpu.memory_space<vmem>>, %arg5: memref<1x1xf32, #tpu.memory_space<smem>>, %arg6: memref<1x128xf32, #tpu.memory_space<vmem>>) attributes {dimension_semantics = [#tpu.dimension_semantics<parallel>], iteration_bounds = array<i64: 1>, scalar_prefetch = 0 : i64, scratch_operands = 0 : i64, tpu.core_type = #tpu.core_type<tc>, window_params = [{transform_indices = @transform_0, window_bounds = array<i64: 128, 32>}, {pipeline_mode = #tpu.pipeline_mode<synchronous>, transform_indices = @transform_1, window_bounds = array<i64: 32, 32>}, {pipeline_mode = #tpu.pipeline_mode<synchronous>, transform_indices = @transform_2, window_bounds = array<i64: 32, 1>}, {pipeline_mode = #tpu.pipeline_mode<synchronous>, transform_indices = @transform_3, window_bounds = array<i64: 1, 32>}, {transform_indices = @transform_4, window_bounds = array<i64: 1, 1>}, {transform_indices = @transform_5, window_bounds = array<i64: 1, 128>}]} {
    %c0 = arith.constant 0 : index
    %c0_0 = arith.constant 0 : index
    %0 = vector.load %arg2[%c0, %c0_0] : memref<32x32xf32, #tpu.memory_space<vmem>>, vector<32x32xf32>
    %c0_1 = arith.constant 0 : index
    %c0_2 = arith.constant 0 : index
    %1 = vector.load %arg1[%c0_1, %c0_2] : memref<128x32xf32, #tpu.memory_space<vmem>>, vector<128x32xf32>
    %cst = arith.constant dense<0.000000e+00> : vector<32x128xf32>
    %2 = tpu.matmul %0, %1, %cst {dimension_numbers = #tpu.dot_dimension_numbers<[1], [1], [0], [0], [0, 0, 1, 0], [], []>} : vector<32x32xf32>, vector<128x32xf32>, vector<32x128xf32> -> vector<32x128xf32>
    %c0_3 = arith.constant 0 : index
    %c0_4 = arith.constant 0 : index
    %3 = vector.load %arg3[%c0_3, %c0_4] : memref<32x1xf32, #tpu.memory_space<vmem>>, vector<32x1xf32>
    %4 = vector.broadcast %3 : vector<32x1xf32> to vector<32x128xf32>
    %5 = arith.addf %2, %4 : vector<32x128xf32>
    %cst_5 = arith.constant 1.000000e-01 : f32
    %6 = vector.broadcast %cst_5 : f32 to vector<32x128xf32>
    %7 = arith.mulf %6, %5 : vector<32x128xf32>
    %cst_6 = arith.constant 0.000000e+00 : f32
    %8 = vector.broadcast %cst_6 : f32 to vector<32x128xf32>
    %9 = arith.maximumf %7, %8 : vector<32x128xf32>
    %c0_7 = arith.constant 0 : index
    %c0_8 = arith.constant 0 : index
    %10 = vector.load %arg4[%c0_7, %c0_8] : memref<1x32xf32, #tpu.memory_space<vmem>>, vector<1x32xf32>
    %cst_9 = arith.constant dense<0.000000e+00> : vector<1x128xf32>
    %11 = tpu.matmul %10, %9, %cst_9 {dimension_numbers = #tpu.dot_dimension_numbers<[1], [0], [0], [1], [0, 0, 1, 1], [], []>} : vector<1x32xf32>, vector<32x128xf32>, vector<1x128xf32> -> vector<1x128xf32>
    %c0_10 = arith.constant 0 : index
    %c0_11 = arith.constant 0 : index
    %12 = memref.load %arg5[%c0_10, %c0_11] : memref<1x1xf32, #tpu.memory_space<smem>>
    %13 = vector.broadcast %12 : f32 to vector<1x128xf32>
    %14 = arith.addf %11, %13 : vector<1x128xf32>
    %cst_12 = arith.constant 1.000000e-01 : f32
    %15 = vector.broadcast %cst_12 : f32 to vector<1x128xf32>
    %16 = arith.mulf %15, %14 : vector<1x128xf32>
    %17 = arith.negf %16 : vector<1x128xf32>
    %18 = math.exp %17 : vector<1x128xf32>
    %cst_13 = arith.constant 1.000000e+00 : f32
    %19 = vector.broadcast %cst_13 : f32 to vector<1x128xf32>
    %20 = arith.addf %19, %18 : vector<1x128xf32>
    %21 = arith.divf %19, %20 : vector<1x128xf32>
    %c0_14 = arith.constant 0 : index
    %c0_15 = arith.constant 0 : index
    %22 = vector.load %arg6[%c0_14, %c0_15] : memref<1x128xf32, #tpu.memory_space<vmem>>, vector<1x128xf32>
    tpu.vector_store %arg6[%c0_14, %c0_15], %21 {strides = array<i32>} : memref<1x128xf32, #tpu.memory_space<vmem>>, vector<1x128xf32>,
    return
  }
  func.func @transform_0(%arg0: i32) -> (i32, i32) {
    %c0_i32 = arith.constant 0 : i32
    %c0_i32_0 = arith.constant 0 : i32
    return %arg0, %c0_i32 : i32, i32
  }
  func.func @transform_1(%arg0: i32) -> (i32, i32) {
    %c0_i32 = arith.constant 0 : i32
    %c0_i32_0 = arith.constant 0 : i32
    %c0_i32_1 = arith.constant 0 : i32
    return %c0_i32, %c0_i32_0 : i32, i32
  }
  func.func @transform_2(%arg0: i32) -> (i32, i32) {
    %c0_i32 = arith.constant 0 : i32
    %c0_i32_0 = arith.constant 0 : i32
    %c0_i32_1 = arith.constant 0 : i32
    return %c0_i32, %c0_i32_0 : i32, i32
  }
  func.func @transform_3(%arg0: i32) -> (i32, i32) {
    %c0_i32 = arith.constant 0 : i32
    %c0_i32_0 = arith.constant 0 : i32
    %c0_i32_1 = arith.constant 0 : i32
    return %c0_i32, %c0_i32_0 : i32, i32
  }
  func.func @transform_4(%arg0: i32) -> (i32, i32) {
    %c0_i32 = arith.constant 0 : i32
    %c0_i32_0 = arith.constant 0 : i32
    %c0_i32_1 = arith.constant 0 : i32
    return %c0_i32, %c0_i32_0 : i32, i32
  }
  func.func @transform_5(%arg0: i32) -> (i32, i32) {
    %c0_i32 = arith.constant 0 : i32
    %c0_i32_0 = arith.constant 0 : i32
    return %c0_i32, %arg0 : i32, i32
  }
}

</mosaic_0001>

<llo_original>
// kernel: tpu_custom_call.1
$region0: #{tpu_custom_call.1}
  #allocation0 [shape = 'u32[]', space=smem, size = 0x4, offset = 0x4, fixed_abs, tag = 'smem constant byte address 0x4 - core index']
  #allocation1 [shape = 'u32[144,128]{1,0:T(1,128)}', space=vmem, size = 0x12000, scoped, tag = 'internal scratch']
  #allocation2 [shape = 'f32[1,1]{1,0:T(1,128)S(6)}', space=smem, size = 0x200, scoped, tag = 'scoped memory for tpu_custom_call.1']
  %s0 = inlined_call_operand.hbm [shape: f32[16,32], index: 0, kind: input, shape index: {}]
  %s1 = inlined_call_operand.vmem [shape: f32[32,32], index: 1, kind: input, shape index: {}]
  %s2 = inlined_call_operand.vmem [shape: f32[32,1], index: 2, kind: input, shape index: {}]
  %s3 = inlined_call_operand.vmem [shape: f32[1,32], index: 3, kind: input, shape index: {}]
  %s4 = inlined_call_operand.<no memory space> [shape: f32[1,1], index: 4, kind: input, shape index: {}]
  %s5 = inlined_call_operand.hbm [shape: f32[1,16], index: 5, kind: output, shape index: {}]
  %s6 = sld [smem:[#allocation0]]
  $region34: #{tpu_custom_call.1} parent=0
    _
  %s8 = ssub.s32 1, %s6
  %s9 = scalar_select 0, %s8, %s6
  %10 = sst [smem:[#allocation2]] %s4
  $region1: #{tpu_custom_call.1} parent=0
    #allocation3 [shape = 'u8[65536]{0}', space=vmem, size = 0x10000, scoped, tag = 'input window, operand 0, single buffered']
    #allocation4 [shape = 's32[1]{0}', space=sflag, size = 0x4, scoped, tag = 'scoped memory for tpu_custom_call.1']
    #allocation5 [shape = 's32[1]{0}', space=sflag, size = 0x4, scoped, tag = 'scoped memory for tpu_custom_call.1']
    #allocation6 [shape = 'u8[512]{0}', space=vmem, size = 0x400, scoped, tag = 'output window, operand 0, single buffered']
    %11 = vsyncpa [#allocation4], 0
    %12 = vsyncpa [#allocation5], 0
    // Predicated region
    $region2: #{tpu_custom_call.1} parent=1 // pred_check
      _
    $region3: #{tpu_custom_call.1} parent=1 // pred_check_branch
      %14 = sbr.rel (0) target = $region5
    $region4: #{tpu_custom_call.1} parent=1 // pred_region
      %s16 = ssub.s32 2048, 256
      %17 = vsyncadd [#allocation4], %s16
      %s18 = sshll.u32 [#allocation3], 4
      %s19 = int_to_ptr.vmem [resolvable:$true] %s18
      %24 = dma.hbm_to_vmem [thread:$0]  %s0, 256, %s19, [#allocation4], 128, 128, 8
    $region5: #{tpu_custom_call.1} parent=1 // pred_fallthru
      _
    // Predicated region
    $region6: #{tpu_custom_call.1} parent=1 // pred_check
      _
    $region7: #{tpu_custom_call.1} parent=1 // pred_check_branch
      %26 = sbr.rel (0) target = $region9
    $region8: #{tpu_custom_call.1} parent=1 // pred_region
      _
    $region9: #{tpu_custom_call.1} parent=1 // pred_fallthru
      _
    // Predicated region
    $region10: #{tpu_custom_call.1} parent=1 // pred_check
      _
    $region11: #{tpu_custom_call.1} parent=1 // pred_check_branch
      %28 = sbr.rel (0) target = $region13
    $region12: #{tpu_custom_call.1} parent=1 // pred_region
      _
    $region13: #{tpu_custom_call.1} parent=1 // pred_fallthru
      _
    // Predicated region
    $region14: #{tpu_custom_call.1} parent=1 // pred_check
      _
    $region15: #{tpu_custom_call.1} parent=1 // pred_check_branch
      %30 = sbr.rel (0) target = $region17
    $region16: #{tpu_custom_call.1} parent=1 // pred_region
      _
    $region17: #{tpu_custom_call.1} parent=1 // pred_fallthru
      _
    // Predicated region
    $region18: #{tpu_custom_call.1} parent=1 // pred_check
      _
    $region19: #{tpu_custom_call.1} parent=1 // pred_check_branch
      %32 = sbr.rel (0) target = $region21
    $region20: #{tpu_custom_call.1} parent=1 // pred_region
      _
    $region21: #{tpu_custom_call.1} parent=1 // pred_fallthru
      _
    // Predicated region
    $region22: #{tpu_custom_call.1} parent=1 // pred_check
      _
    $region23: #{tpu_custom_call.1} parent=1 // pred_check_branch
      %34 = sbr.rel (0) target = $region25
    $region24: #{tpu_custom_call.1} parent=1 // pred_region
      %35 = dma.done [#allocation4], 2048
    $region25: #{tpu_custom_call.1} parent=1 // pred_fallthru
      _
    %v36 = vld [vmem:[%s1] sm:$0xff]
    %v37 = vld [vmem:[%s1 + $0x8] sm:$0xff]
    %v38 = vld [vmem:[%s1 + $0x10] sm:$0xff]
    %v39 = vld [vmem:[%s1 + $0x18] sm:$0xff]
    %v40 = vld [vmem:[#allocation3] sm:$0xff]
    %v41 = vld [vmem:[#allocation3 + $0x8] sm:$0xff]
    %v42 = vld [vmem:[#allocation3 + $0x10] sm:$0xff]
    %v43 = vld [vmem:[#allocation3 + $0x18] sm:$0xff]
    %v44 = vld [vmem:[#allocation3 + $0x20] sm:$0xff]
    %v45 = vld [vmem:[#allocation3 + $0x28] sm:$0xff]
    %v46 = vld [vmem:[#allocation3 + $0x30] sm:$0xff]
    %v47 = vld [vmem:[#allocation3 + $0x38] sm:$0xff]
    %v48 = vld [vmem:[#allocation3 + $0x40] sm:$0xff]
    %v49 = vld [vmem:[#allocation3 + $0x48] sm:$0xff]
    %v50 = vld [vmem:[#allocation3 + $0x50] sm:$0xff]
    %v51 = vld [vmem:[#allocation3 + $0x58] sm:$0xff]
    %v52 = vld [vmem:[#allocation3 + $0x60] sm:$0xff]
    %v53 = vld [vmem:[#allocation3 + $0x68] sm:$0xff]
    %v54 = vld [vmem:[#allocation3 + $0x70] sm:$0xff]
    %v55 = vld [vmem:[#allocation3 + $0x78] sm:$0xff]
    %v56 = vld [vmem:[%s2] sm:$0xff]
    %v57 = vld [vmem:[%s2 + $0x8] sm:$0xff]
    %v58 = vld [vmem:[%s2 + $0x10] sm:$0xff]
    %v59 = vld [vmem:[%s2 + $0x18] sm:$0xff]
    %61 = vset.pattern.permute.xlu0 0
    %62 = vperm.xlu0 %61, %v56
    %v63 = vpop.permute.xlu0 %62
    %66 = vset.pattern.permute.xlu0 0
    %67 = vperm.xlu0 %66, %v57
    %v68 = vpop.permute.xlu0 %67
    %71 = vset.pattern.permute.xlu0 0
    %72 = vperm.xlu0 %71, %v58
    %v73 = vpop.permute.xlu0 %72
    %76 = vset.pattern.permute.xlu0 0
    %77 = vperm.xlu0 %76, %v59
    %v78 = vpop.permute.xlu0 %77
    %vm80 = vcmask 261120
    %v82 = vsel %vm80, %v36, 0
    %v85 = vsel %vm80, %v37, 0
    %v88 = vsel %vm80, %v38, 0
    %v91 = vsel %vm80, %v39, 0
    %v94 = vsel %vm80, %v40, 0
    %v97 = vsel %vm80, %v41, 0
    %v100 = vsel %vm80, %v42, 0
    %v103 = vsel %vm80, %v43, 0
    %v106 = vsel %vm80, %v44, 0
    %v109 = vsel %vm80, %v45, 0
    %v112 = vsel %vm80, %v46, 0
    %v115 = vsel %vm80, %v47, 0
    %v118 = vsel %vm80, %v48, 0
    %v121 = vsel %vm80, %v49, 0
    %v124 = vsel %vm80, %v50, 0
    %v127 = vsel %vm80, %v51, 0
    %v130 = vsel %vm80, %v52, 0
    %v133 = vsel %vm80, %v53, 0
    %v136 = vsel %vm80, %v54, 0
    %v139 = vsel %vm80, %v55, 0
    %141 = vmatprep.subr.mxu0 0.0
    %142 = vmatpush1.xpose.msra.mxu0 %v94
    %143 = vmatprep.subr.mxu0 0.0
    %144 = vmatpush1.xpose.msra.mxu0 %v97
    %145 = vmatprep.subr.mxu0 0.0
    %146 = vmatpush1.xpose.msra.mxu0 %v100
    %147 = vmatprep.subr.mxu0 0.0
    %148 = vmatpush1.xpose.msra.mxu0 %v103
    %149 = vmatprep.subr.mxu0 0.0
    %150 = vmatpush1.xpose.msra.mxu0 %v106
    %151 = vmatprep.subr.mxu0 0.0
    %152 = vmatpush1.xpose.msra.mxu0 %v109
    %153 = vmatprep.subr.mxu0 0.0
    %154 = vmatpush1.xpose.msra.mxu0 %v112
    %155 = vmatprep.subr.mxu0 0.0
    %156 = vmatpush1.xpose.msra.mxu0 %v115
    %157 = vmatprep.subr.mxu0 0.0
    %158 = vmatpush1.xpose.msra.mxu0 %v118
    %159 = vmatprep.subr.mxu0 0.0
    %160 = vmatpush1.xpose.msra.mxu0 %v121
    %161 = vmatprep.subr.mxu0 0.0
    %162 = vmatpush1.xpose.msra.mxu0 %v124
    %163 = vmatprep.subr.mxu0 0.0
    %164 = vmatpush1.xpose.msra.mxu0 %v127
    %165 = vmatprep.subr.mxu0 0.0
    %166 = vmatpush1.xpose.msra.mxu0 %v130
    %167 = vmatprep.subr.mxu0 0.0
    %168 = vmatpush1.xpose.msra.mxu0 %v133
    %169 = vmatprep.subr.mxu0 0.0
    %170 = vmatpush1.xpose.msra.mxu0 %v136
    %171 = vmatprep.subr.mxu0 0.0
    %172 = vmatpush1.xpose.msra.mxu0 %v139
    %173 = vmatprep.subr.mxu0 0.0
    %174 = vmatpush1.xpose.msra.mxu0 0.0
    %175 = vmatprep.subr.mxu0 0.0
    %176 = vmatpush1.xpose.msra.mxu0 0.0
    %177 = vmatprep.subr.mxu0 0.0
    %178 = vmatpush1.xpose.msra.mxu0 0.0
    %179 = vmatprep.subr.mxu0 0.0
    %180 = vmatpush1.xpose.msra.mxu0 0.0
    %181 = vmatprep.subr.mxu0 0.0
    %182 = vmatpush1.xpose.msra.mxu0 0.0
    %183 = vmatprep.subr.mxu0 0.0
    %184 = vmatpush1.xpose.msra.mxu0 0.0
    %185 = vmatprep.subr.mxu0 0.0
    %186 = vmatpush1.xpose.msra.mxu0 0.0
    %187 = vmatprep.subr.mxu0 0.0
    %188 = vmatpush1.xpose.msra.mxu0 0.0
    %189 = vmatprep.subr.mxu0 0.0
    %190 = vmatpush1.xpose.msra.mxu0 0.0
    %191 = vmatprep.subr.mxu0 0.0
    %192 = vmatpush1.xpose.msra.mxu0 0.0
    %193 = vmatprep.subr.mxu0 0.0
    %194 = vmatpush1.xpose.msra.mxu0 0.0
    %195 = vmatprep.subr.mxu0 0.0
    %196 = vmatpush1.xpose.msra.mxu0 0.0
    %197 = vmatprep.subr.mxu0 0.0
    %198 = vmatpush1.xpose.msra.mxu0 0.0
    %199 = vmatprep.subr.mxu0 0.0
    %200 = vmatpush1.xpose.msra.mxu0 0.0
    %201 = vmatprep.subr.mxu0 0.0
    %202 = vmatpush1.xpose.msra.mxu0 0.0
    %203 = vmatprep.subr.mxu0 0.0
    %204 = vmatpush1.xpose.msra.mxu0 0.0
    %205 = vmatprep.mubr.f32.mxu0 0.0
    %206 = vmatmul.mubr.f32.gmra.mrb[0].mxu0 %v82
    %v207 = vpop.f32.mrb[0].mxu0
    %v208 = vadd.f32 %v63, %v207
    %v209 = vpop.f32.mrb[0].mxu0
    %210 = vmatprep.mubr.f32.mxu0 0.0
    %211 = vmatmul.mubr.f32.gmra.mrb[0].mxu0 %v85
    %v212 = vpop.f32.mrb[0].mxu0
    %v213 = vadd.f32 %v68, %v212
    %v214 = vpop.f32.mrb[0].mxu0
    %215 = vmatprep.mubr.f32.mxu0 0.0
    %216 = vmatmul.mubr.f32.gmra.mrb[0].mxu0 %v88
    %v217 = vpop.f32.mrb[0].mxu0
    %v218 = vadd.f32 %v73, %v217
    %v219 = vpop.f32.mrb[0].mxu0
    %220 = vmatprep.mubr.f32.mxu0 0.0
    %221 = vmatmul.mubr.f32.gmra.mrb[0].mxu0 %v91
    %v222 = vpop.f32.mrb[0].mxu0
    %v223 = vadd.f32 %v78, %v222
    %v224 = vpop.f32.mrb[0].mxu0
    %225 = vdwg.mxu0
    %v226 = vmul.f32 %v208, 0.1
    %v227 = vmul.f32 %v213, 0.1
    %v228 = vmul.f32 %v218, 0.1
    %v229 = vmul.f32 %v223, 0.1
    %v230 = vmax.f32 %v226, 0.0
    %v231 = vmax.f32 %v227, 0.0
    %v232 = vmax.f32 %v228, 0.0
    %v233 = vmax.f32 %v229, 0.0
    %v234 = vld [vmem:[%s3] sm:$0x1]
    %s235 = sld [smem:[#allocation2]]
    %v236 = vstv %s235
    %v238 = vsel %vm80, %v234, 0
    %240 = vmatprep.subr.mxu0 0.0
    %241 = vmatpush1.msra.mxu0 %v230
    %242 = vmatprep.subr.mxu0 0.0
    %243 = vmatpush1.msra.mxu0 %v231
    %244 = vmatprep.subr.mxu0 0.0
    %245 = vmatpush1.msra.mxu0 %v232
    %246 = vmatprep.subr.mxu0 0.0
    %247 = vmatpush1.msra.mxu0 %v233
    %248 = vmatprep.subr.mxu0 0.0
    %249 = vmatpush1.msra.mxu0 0.0
    %250 = vmatprep.subr.mxu0 0.0
    %251 = vmatpush1.msra.mxu0 0.0
    %252 = vmatprep.subr.mxu0 0.0
    %253 = vmatpush1.msra.mxu0 0.0
    %254 = vmatprep.subr.mxu0 0.0
    %255 = vmatpush1.msra.mxu0 0.0
    %256 = vmatprep.subr.mxu0 0.0
    %257 = vmatpush1.msra.mxu0 0.0
    %258 = vmatprep.subr.mxu0 0.0
    %259 = vmatpush1.msra.mxu0 0.0
    %260 = vmatprep.subr.mxu0 0.0
    %261 = vmatpush1.msra.mxu0 0.0
    %262 = vmatprep.subr.mxu0 0.0
    %263 = vmatpush1.msra.mxu0 0.0
    %264 = vmatprep.subr.mxu0 0.0
    %265 = vmatpush1.msra.mxu0 0.0
    %266 = vmatprep.subr.mxu0 0.0
    %267 = vmatpush1.msra.mxu0 0.0
    %268 = vmatprep.subr.mxu0 0.0
    %269 = vmatpush1.msra.mxu0 0.0
    %270 = vmatprep.subr.mxu0 0.0
    %271 = vmatpush1.msra.mxu0 0.0
    %272 = vmatprep.subr.mxu0 0.0
    %273 = vmatpush1.msra.mxu0 0.0
    %274 = vmatprep.subr.mxu0 0.0
    %275 = vmatpush1.msra.mxu0 0.0
    %276 = vmatprep.subr.mxu0 0.0
    %277 = vmatpush1.msra.mxu0 0.0
    %278 = vmatprep.subr.mxu0 0.0
    %279 = vmatpush1.msra.mxu0 0.0
    %280 = vmatprep.subr.mxu0 0.0
    %281 = vmatpush1.msra.mxu0 0.0
    %282 = vmatprep.subr.mxu0 0.0
    %283 = vmatpush1.msra.mxu0 0.0
    %284 = vmatprep.subr.mxu0 0.0
    %285 = vmatpush1.msra.mxu0 0.0
    %286 = vmatprep.subr.mxu0 0.0
    %287 = vmatpush1.msra.mxu0 0.0
    %288 = vmatprep.subr.mxu0 0.0
    %289 = vmatpush1.msra.mxu0 0.0
    %290 = vmatprep.subr.mxu0 0.0
    %291 = vmatpush1.msra.mxu0 0.0
    %292 = vmatprep.subr.mxu0 0.0
    %293 = vmatpush1.msra.mxu0 0.0
    %294 = vmatprep.subr.mxu0 0.0
    %295 = vmatpush1.msra.mxu0 0.0
    %296 = vmatprep.subr.mxu0 0.0
    %297 = vmatpush1.msra.mxu0 0.0
    %298 = vmatprep.subr.mxu0 0.0
    %299 = vmatpush1.msra.mxu0 0.0
    %300 = vmatprep.subr.mxu0 0.0
    %301 = vmatpush1.msra.mxu0 0.0
    %302 = vmatprep.subr.mxu0 0.0
    %303 = vmatpush1.msra.mxu0 0.0
    %304 = vmatprep.mubr.f32.mxu0 0.0
    %305 = vmatmul.mubr.f32.gmra.mrb[0].mxu0 %v238
    %v306 = vpop.f32.mrb[0].mxu0
    %v307 = vadd.f32 %v236, %v306
    %v308 = vpop.f32.mrb[0].mxu0
    %309 = vdwg.mxu0
    %v310 = vmul.f32 %v307, 0.1
    %v311 = vxor.u32 %v310, 2147483648
    %v312 = vmul.f32 %v311, 1.442695
    %v313 = vpow.pop %v312
    %v314 = vadd.f32 %v313, 1.0
    %v315 = vrcp.pop %v314
    %v316 = vmul.f32 1.0, %v315
    %317 = vst [vmem:[#allocation6] sm:$0x1] %v316
    // Predicated region
    $region26: #{tpu_custom_call.1} parent=1 // pred_check
      _
    $region27: #{tpu_custom_call.1} parent=1 // pred_check_branch
      %319 = sbr.rel (0) target = $region29
    $region28: #{tpu_custom_call.1} parent=1 // pred_region
      %s321 = ssub.s32 16, 16
      %322 = vsyncadd [#allocation5], %s321
      %s324 = sshll.u32 [#allocation6], 4
      %s325 = int_to_ptr.vmem [resolvable:$true] %s324
      %327 = dma.vmem_to_hbm [thread:$0]  %s325, 16, %s5, [#allocation5]
    $region29: #{tpu_custom_call.1} parent=1 // pred_fallthru
      _
    // Predicated region
    $region30: #{tpu_custom_call.1} parent=1 // pred_check
      _
    $region31: #{tpu_custom_call.1} parent=1 // pred_check_branch
      %329 = sbr.rel (0) target = $region33
    $region32: #{tpu_custom_call.1} parent=1 // pred_region
      %330 = dma.done [#allocation5], 16
    $region33: #{tpu_custom_call.1} parent=1 // pred_fallthru
      _
    %331 = vsyncpa [#allocation4], 1
    %332 = vsyncpa [#allocation5], 1

</llo_original>
